<compile_context>
chip_gen: v5e
topology: v5e:2x2
jax: 0.10.0
libtpu: 0.0.40
codegen_flags: <defaults>
</compile_context>

<pallas_src>
from typing import NamedTuple

import jax
import jax.numpy as jnp
from jax.experimental import pallas as pl
from jax.experimental.pallas import tpu as pltpu


class QRDqnNetworkOutputs(NamedTuple):
    q_values: jnp.ndarray   # (B, num_actions)
    q_dist: jnp.ndarray     # (B, num_taus, num_actions)


_LANE = 128


def _round_up(n: int, m: int) -> int:
    return ((n + m - 1) // m) * m


def _qrdqn_mlp_kernel(x_ref, w1_ref, b1_ref, w2_ref, b2_ref, w3_ref, b3_ref, o_ref):
    # Layer 1: Linear(input_shape -> 128) + ReLU   (bf16 matmul, f32 accumulate)
    h1 = jnp.dot(x_ref[...], w1_ref[...], preferred_element_type=jnp.float32)
    h1 = jnp.maximum(h1 + b1_ref[...], 0.0).astype(w2_ref.dtype)
    # Layer 2: Linear(128 -> 256) + ReLU
    h2 = jnp.dot(h1, w2_ref[...], preferred_element_type=jnp.float32)
    h2 = jnp.maximum(h2 + b2_ref[...], 0.0).astype(w3_ref.dtype)
    # Layer 3: Linear(256 -> padded(num_actions * num_taus)), no activation.
    q = jnp.dot(h2, w3_ref[...], preferred_element_type=jnp.float32) + b3_ref[...]
    o_ref[...] = q.astype(o_ref.dtype)


def init_qrdqn_mlp_params(key, input_shape: int, num_actions: int, num_taus: int):
    """PyTorch nn.Linear-style init (uniform +/- 1/sqrt(fan_in)).

    Weights stored as (in_features, out_features) so the kernel computes x @ W + b
    (equivalent to PyTorch's x @ W.T + b).
    """
    dims = [(input_shape, 128), (128, 256), (256, num_actions * num_taus)]
    params = {}
    keys = jax.random.split(key, 2 * len(dims))
    for i, (fan_in, fan_out) in enumerate(dims):
        bound = 1.0 / (fan_in ** 0.5)
        params[f"w{i + 1}"] = jax.random.uniform(
            keys[2 * i], (fan_in, fan_out), jnp.float32, minval=-bound, maxval=bound)
        params[f"b{i + 1}"] = jax.random.uniform(
            keys[2 * i + 1], (1, fan_out), jnp.float32, minval=-bound, maxval=bound)
    return params


def qrdqn_mlp_forward(x: jnp.ndarray, params, num_actions: int, num_taus: int,
                      *, tile_b: int = 1024) -> QRDqnNetworkOutputs:
    """x: (B, input_shape) f32 -> QRDqnNetworkOutputs(q_values=(B, A), q_dist=(B, T, A))."""
    B, d_in = x.shape
    out_dim = num_actions * num_taus
    padded_out = _round_up(out_dim, _LANE)

    # bf16 weights / activations (MXU-native on v6e/v7x); f32 biases & accumulation.
    x_bf = x.astype(jnp.bfloat16)
    w1 = params["w1"].astype(jnp.bfloat16)
    w2 = params["w2"].astype(jnp.bfloat16)
    w3 = params["w3"].astype(jnp.bfloat16)
    b1, b2, b3 = params["b1"], params["b2"], params["b3"]
    # Zero-pad the quantile head to a lane-dense (multiple-of-128) output width.
    if padded_out != out_dim:
        w3 = jnp.pad(w3, ((0, 0), (0, padded_out - out_dim)))
        b3 = jnp.pad(b3, ((0, 0), (0, padded_out - out_dim)))

    # Batch tiling: whole batch if it fits one tile, else 1024-row tiles
    # (multiple of 8 sublanes; well under the 64 MiB v7x VMEM budget even
    # with double-buffered input/output tiles).
    tb = B if B <= tile_b else tile_b
    grid = (pl.cdiv(B, tb),)

    batch_spec = lambda cols: pl.BlockSpec((tb, cols), lambda i: (i, 0))
    const_spec = lambda arr: pl.BlockSpec(arr.shape, lambda i: (0, 0))

    q_flat = pl.pallas_call(
        _qrdqn_mlp_kernel,
        out_shape=jax.ShapeDtypeStruct((B, padded_out), jnp.float32),
        grid=grid,
        in_specs=[
            batch_spec(d_in),
            const_spec(w1), const_spec(b1),
            const_spec(w2), const_spec(b2),
            const_spec(w3), const_spec(b3),
        ],
        out_specs=batch_spec(padded_out),
        compiler_params=pltpu.CompilerParams(
            dimension_semantics=("parallel",)),
    )(x_bf, w1, b1, w2, b2, w3, b3)

    q_dist = q_flat[:, :out_dim].reshape(B, num_taus, num_actions)
    q_values = jnp.mean(q_dist, axis=1)
    return QRDqnNetworkOutputs(q_values=q_values, q_dist=q_dist)


def _reference_forward(x, params, num_actions, num_taus):
    """Plain-JAX reference with the same bf16-weights / f32-accumulation recipe."""
    bf = lambda a: a.astype(jnp.bfloat16)
    h1 = jnp.maximum(
        jnp.dot(bf(x), bf(params["w1"]), preferred_element_type=jnp.float32)
        + params["b1"], 0.0)
    h2 = jnp.maximum(
        jnp.dot(bf(h1), bf(params["w2"]), preferred_element_type=jnp.float32)
        + params["b2"], 0.0)
    logits = (jnp.dot(bf(h2), bf(params["w3"]), preferred_element_type=jnp.float32)
              + params["b3"])
    q_dist = logits.reshape(-1, num_taus, num_actions)
    return jnp.mean(q_dist, axis=1), q_dist


if __name__ == "__main__":
    key = jax.random.PRNGKey(0)
    k_param, k_x = jax.random.split(key)

    input_shape = 32     # small feature dim
    num_actions = 8      # small action space
    num_taus = 51        # standard QR-DQN quantile count
    batch = 2
    # Quantile midpoints tau_i = (i + 0.5) / N (only their count affects forward()).
    quantiles = (jnp.arange(num_taus, dtype=jnp.float32) + 0.5) / num_taus

    params = init_qrdqn_mlp_params(k_param, input_shape, num_actions, num_taus)
    x = jax.random.normal(k_x, (batch, input_shape), jnp.float32)

    out = qrdqn_mlp_forward(x, params, num_actions, num_taus)
    q_values = jax.block_until_ready(out.q_values)
    q_dist = jax.block_until_ready(out.q_dist)

    ref_q, ref_dist = _reference_forward(x, params, num_actions, num_taus)
    assert q_values.shape == (batch, num_actions)
    assert q_dist.shape == (batch, num_taus, num_actions)
    assert jnp.allclose(q_dist, ref_dist, atol=1e-3, rtol=1e-3), "q_dist mismatch vs reference"
    assert jnp.allclose(q_values, ref_q, atol=1e-3, rtol=1e-3), "q_values mismatch vs reference"

    print("KERNEL_OK")
</pallas_src>

<mosaic_0001>
module attributes {stable_mosaic.version = 11 : i64} {
  func.func @_qrdqn_mlp_kernel(%arg0: i32, %arg1: memref<2x32xbf16, #tpu.memory_space<vmem>>, %arg2: memref<32x128xbf16, #tpu.memory_space<vmem>>, %arg3: memref<1x128xf32, #tpu.memory_space<vmem>>, %arg4: memref<128x256xbf16, #tpu.memory_space<vmem>>, %arg5: memref<1x256xf32, #tpu.memory_space<vmem>>, %arg6: memref<256x512xbf16, #tpu.memory_space<vmem>>, %arg7: memref<1x512xf32, #tpu.memory_space<vmem>>, %arg8: memref<2x512xf32, #tpu.memory_space<vmem>>) attributes {dimension_semantics = [#tpu.dimension_semantics<parallel>], iteration_bounds = array<i64: 1>, scalar_prefetch = 0 : i64, scratch_operands = 0 : i64, tpu.core_type = #tpu.core_type<tc>, window_params = [{transform_indices = @transform_0, window_bounds = array<i64: 2, 32>}, {pipeline_mode = #tpu.pipeline_mode<synchronous>, transform_indices = @transform_1, window_bounds = array<i64: 32, 128>}, {pipeline_mode = #tpu.pipeline_mode<synchronous>, transform_indices = @transform_2, window_bounds = array<i64: 1, 128>}, {pipeline_mode = #tpu.pipeline_mode<synchronous>, transform_indices = @transform_3, window_bounds = array<i64: 128, 256>}, {pipeline_mode = #tpu.pipeline_mode<synchronous>, transform_indices = @transform_4, window_bounds = array<i64: 1, 256>}, {pipeline_mode = #tpu.pipeline_mode<synchronous>, transform_indices = @transform_5, window_bounds = array<i64: 256, 512>}, {pipeline_mode = #tpu.pipeline_mode<synchronous>, transform_indices = @transform_6, window_bounds = array<i64: 1, 512>}, {transform_indices = @transform_7, window_bounds = array<i64: 2, 512>}]} {
    %c0 = arith.constant 0 : index
    %c0_0 = arith.constant 0 : index
    %0 = vector.load %arg1[%c0, %c0_0] : memref<2x32xbf16, #tpu.memory_space<vmem>>, vector<2x32xbf16>
    %c0_1 = arith.constant 0 : index
    %c0_2 = arith.constant 0 : index
    %1 = vector.load %arg2[%c0_1, %c0_2] : memref<32x128xbf16, #tpu.memory_space<vmem>>, vector<32x128xbf16>
    %cst = arith.constant dense<0.000000e+00> : vector<2x128xf32>
    %2 = tpu.matmul %0, %1, %cst {dimension_numbers = #tpu.dot_dimension_numbers<[1], [0], [0], [1], [0, 0, 1, 1], [], []>} : vector<2x32xbf16>, vector<32x128xbf16>, vector<2x128xf32> -> vector<2x128xf32>
    %c0_3 = arith.constant 0 : index
    %c0_4 = arith.constant 0 : index
    %3 = vector.load %arg3[%c0_3, %c0_4] : memref<1x128xf32, #tpu.memory_space<vmem>>, vector<1x128xf32>
    %4 = vector.broadcast %3 : vector<1x128xf32> to vector<2x128xf32>
    %5 = arith.addf %2, %4 : vector<2x128xf32>
    %cst_5 = arith.constant 0.000000e+00 : f32
    %6 = vector.broadcast %cst_5 : f32 to vector<2x128xf32>
    %7 = arith.maximumf %5, %6 : vector<2x128xf32>
    %8 = arith.truncf %7 : vector<2x128xf32> to vector<2x128xbf16>
    %c0_6 = arith.constant 0 : index
    %c0_7 = arith.constant 0 : index
    %9 = vector.load %arg4[%c0_6, %c0_7] : memref<128x256xbf16, #tpu.memory_space<vmem>>, vector<128x256xbf16>
    %cst_8 = arith.constant dense<0.000000e+00> : vector<2x256xf32>
    %10 = tpu.matmul %8, %9, %cst_8 {dimension_numbers = #tpu.dot_dimension_numbers<[1], [0], [0], [1], [0, 0, 1, 1], [], []>} : vector<2x128xbf16>, vector<128x256xbf16>, vector<2x256xf32> -> vector<2x256xf32>
    %c0_9 = arith.constant 0 : index
    %c0_10 = arith.constant 0 : index
    %11 = vector.load %arg5[%c0_9, %c0_10] : memref<1x256xf32, #tpu.memory_space<vmem>>, vector<1x256xf32>
    %12 = vector.broadcast %11 : vector<1x256xf32> to vector<2x256xf32>
    %13 = arith.addf %10, %12 : vector<2x256xf32>
    %cst_11 = arith.constant 0.000000e+00 : f32
    %14 = vector.broadcast %cst_11 : f32 to vector<2x256xf32>
    %15 = arith.maximumf %13, %14 : vector<2x256xf32>
    %16 = arith.truncf %15 : vector<2x256xf32> to vector<2x256xbf16>
    %c0_12 = arith.constant 0 : index
    %c0_13 = arith.constant 0 : index
    %17 = vector.load %arg6[%c0_12, %c0_13] : memref<256x512xbf16, #tpu.memory_space<vmem>>, vector<256x512xbf16>
    %cst_14 = arith.constant dense<0.000000e+00> : vector<2x512xf32>
    %18 = tpu.matmul %16, %17, %cst_14 {dimension_numbers = #tpu.dot_dimension_numbers<[1], [0], [0], [1], [0, 0, 1, 1], [], []>} : vector<2x256xbf16>, vector<256x512xbf16>, vector<2x512xf32> -> vector<2x512xf32>
    %c0_15 = arith.constant 0 : index
    %c0_16 = arith.constant 0 : index
    %19 = vector.load %arg7[%c0_15, %c0_16] : memref<1x512xf32, #tpu.memory_space<vmem>>, vector<1x512xf32>
    %20 = vector.broadcast %19 : vector<1x512xf32> to vector<2x512xf32>
    %21 = arith.addf %18, %20 : vector<2x512xf32>
    %c0_17 = arith.constant 0 : index
    %c0_18 = arith.constant 0 : index
    %22 = vector.load %arg8[%c0_17, %c0_18] : memref<2x512xf32, #tpu.memory_space<vmem>>, vector<2x512xf32>
    tpu.vector_store %arg8[%c0_17, %c0_18], %21 {strides = array<i32>} : memref<2x512xf32, #tpu.memory_space<vmem>>, vector<2x512xf32>,
    return
  }
  func.func @transform_0(%arg0: i32) -> (i32, i32) {
    %c0_i32 = arith.constant 0 : i32
    %c0_i32_0 = arith.constant 0 : i32
    return %arg0, %c0_i32 : i32, i32
  }
  func.func @transform_1(%arg0: i32) -> (i32, i32) {
    %c0_i32 = arith.constant 0 : i32
    %c0_i32_0 = arith.constant 0 : i32
    %c0_i32_1 = arith.constant 0 : i32
    return %c0_i32, %c0_i32_0 : i32, i32
  }
  func.func @transform_2(%arg0: i32) -> (i32, i32) {
    %c0_i32 = arith.constant 0 : i32
    %c0_i32_0 = arith.constant 0 : i32
    %c0_i32_1 = arith.constant 0 : i32
    return %c0_i32, %c0_i32_0 : i32, i32
  }
  func.func @transform_3(%arg0: i32) -> (i32, i32) {
    %c0_i32 = arith.constant 0 : i32
    %c0_i32_0 = arith.constant 0 : i32
    %c0_i32_1 = arith.constant 0 : i32
    return %c0_i32, %c0_i32_0 : i32, i32
  }
  func.func @transform_4(%arg0: i32) -> (i32, i32) {
    %c0_i32 = arith.constant 0 : i32
    %c0_i32_0 = arith.constant 0 : i32
    %c0_i32_1 = arith.constant 0 : i32
    return %c0_i32, %c0_i32_0 : i32, i32
  }
  func.func @transform_5(%arg0: i32) -> (i32, i32) {
    %c0_i32 = arith.constant 0 : i32
    %c0_i32_0 = arith.constant 0 : i32
    %c0_i32_1 = arith.constant 0 : i32
    return %c0_i32, %c0_i32_0 : i32, i32
  }
  func.func @transform_6(%arg0: i32) -> (i32, i32) {
    %c0_i32 = arith.constant 0 : i32
    %c0_i32_0 = arith.constant 0 : i32
    %c0_i32_1 = arith.constant 0 : i32
    return %c0_i32, %c0_i32_0 : i32, i32
  }
  func.func @transform_7(%arg0: i32) -> (i32, i32) {
    %c0_i32 = arith.constant 0 : i32
    %c0_i32_0 = arith.constant 0 : i32
    return %arg0, %c0_i32 : i32, i32
  }
}

</mosaic_0001>

<llo_original>
// kernel: tpu_custom_call.1
$region0: #{tpu_custom_call.1}
  #allocation0 [shape = 'u32[]', space=smem, size = 0x4, offset = 0x4, fixed_abs, tag = 'smem constant byte address 0x4 - core index']
  #allocation1 [shape = 'u32[72,128]{1,0:T(1,128)}', space=vmem, size = 0x9000, scoped, tag = 'internal scratch']
  %s0 = inlined_call_operand.hbm [shape: bf16[2,32], index: 0, kind: input, shape index: {}]
  %s1 = inlined_call_operand.hbm [shape: bf16[32,128], index: 1, kind: input, shape index: {}]
  %s2 = inlined_call_operand.vmem [shape: f32[1,128], index: 2, kind: input, shape index: {}]
  %s3 = inlined_call_operand.hbm [shape: bf16[128,256], index: 3, kind: input, shape index: {}]
  %s4 = inlined_call_operand.hbm [shape: f32[1,256], index: 4, kind: input, shape index: {}]
  %s5 = inlined_call_operand.hbm [shape: bf16[256,512], index: 5, kind: input, shape index: {}]
  %s6 = inlined_call_operand.vmem [shape: f32[1,512], index: 6, kind: input, shape index: {}]
  %s7 = inlined_call_operand.hbm [shape: f32[2,512], index: 7, kind: output, shape index: {}]
  %s8 = sld [smem:[#allocation0]]
  $region58: #{tpu_custom_call.1} parent=0
    _
  %s10 = ssub.s32 1, %s8
  %s11 = scalar_select 0, %s10, %s8
  $region1: #{tpu_custom_call.1} parent=0
    #allocation2 [shape = 'u8[512]{0}', space=vmem, size = 0x400, scoped, tag = 'input window, operand 0, single buffered']
    #allocation3 [shape = 's32[1]{0}', space=sflag, size = 0x4, scoped, tag = 'scoped memory for tpu_custom_call.1']
    #allocation4 [shape = 's32[1]{0}', space=sflag, size = 0x4, scoped, tag = 'scoped memory for tpu_custom_call.1']
    #allocation5 [shape = 'u8[8192]{0}', space=vmem, size = 0x2000, scoped, tag = 'input window, operand 1, single buffered']
    #allocation6 [shape = 's32[1]{0}', space=sflag, size = 0x4, scoped, tag = 'scoped memory for tpu_custom_call.1']
    #allocation7 [shape = 'u8[65536]{0}', space=vmem, size = 0x10000, scoped, tag = 'input window, operand 3, single buffered']
    #allocation8 [shape = 'u8[1024]{0}', space=vmem, size = 0x400, scoped, tag = 'input window, operand 4, single buffered']
    #allocation9 [shape = 's32[1]{0}', space=sflag, size = 0x4, scoped, tag = 'scoped memory for tpu_custom_call.1']
    #allocation10 [shape = 'u8[262144]{0}', space=vmem, size = 0x40000, scoped, tag = 'input window, operand 5, single buffered']
    #allocation11 [shape = 'u8[4096]{0}', space=vmem, size = 0x1000, scoped, tag = 'output window, operand 0, single buffered']
    %12 = vsyncpa [#allocation3], 0
    %13 = vsyncpa [#allocation6], 0
    %14 = vsyncpa [#allocation9], 0
    %15 = vsyncpa [#allocation4], 0
    // Predicated region
    $region2: #{tpu_custom_call.1} parent=1 // pred_check
      _
    $region3: #{tpu_custom_call.1} parent=1 // pred_check_branch
      %17 = sbr.rel (0) target = $region5
    $region4: #{tpu_custom_call.1} parent=1 // pred_region
      %19 = vsyncadd [#allocation3], 0
      %s21 = sshll.u32 %s0, 4
      %s22 = int_to_ptr.hbm [resolvable:$true] %s21
      %s23 = sshll.u32 [#allocation2], 4
      %s24 = int_to_ptr.vmem [resolvable:$true] %s23
      %26 = dma.hbm_to_vmem [thread:$0]  %s22, 16, %s24, [#allocation3]
    $region5: #{tpu_custom_call.1} parent=1 // pred_fallthru
      _
    // Predicated region
    $region6: #{tpu_custom_call.1} parent=1 // pred_check
      _
    $region7: #{tpu_custom_call.1} parent=1 // pred_check_branch
      %28 = sbr.rel (0) target = $region9
    $region8: #{tpu_custom_call.1} parent=1 // pred_region
      %30 = vsyncadd [#allocation6], 0
      %s31 = sshll.u32 %s1, 4
      %s32 = int_to_ptr.hbm [resolvable:$true] %s31
      %s33 = sshll.u32 [#allocation5], 4
      %s34 = int_to_ptr.vmem [resolvable:$true] %s33
      %39 = dma.hbm_to_vmem [thread:$0]  %s32, 256, %s34, [#allocation6], 64, 64, 4
    $region9: #{tpu_custom_call.1} parent=1 // pred_fallthru
      _
    // Predicated region
    $region10: #{tpu_custom_call.1} parent=1 // pred_check
      _
    $region11: #{tpu_custom_call.1} parent=1 // pred_check_branch
      %41 = sbr.rel (0) target = $region13
    $region12: #{tpu_custom_call.1} parent=1 // pred_region
      _
    $region13: #{tpu_custom_call.1} parent=1 // pred_fallthru
      _
    // Predicated region
    $region14: #{tpu_custom_call.1} parent=1 // pred_check
      _
    $region15: #{tpu_custom_call.1} parent=1 // pred_check_branch
      %43 = sbr.rel (0) target = $region17
    $region16: #{tpu_custom_call.1} parent=1 // pred_region
      %45 = vsyncadd [#allocation6], 0
      %s46 = sshll.u32 %s3, 4
      %s47 = int_to_ptr.hbm [resolvable:$true] %s46
      %s48 = sshll.u32 [#allocation7], 4
      %s49 = int_to_ptr.vmem [resolvable:$true] %s48
      %54 = dma.hbm_to_vmem [thread:$0]  %s47, 2048, %s49, [#allocation6], 128, 128, 8
    $region17: #{tpu_custom_call.1} parent=1 // pred_fallthru
      _
    // Predicated region
    $region18: #{tpu_custom_call.1} parent=1 // pred_check
      _
    $region19: #{tpu_custom_call.1} parent=1 // pred_check_branch
      %56 = sbr.rel (0) target = $region21
    $region20: #{tpu_custom_call.1} parent=1 // pred_region
      %58 = vsyncadd [#allocation9], 0
      %s60 = sshll.u32 %s4, 4
      %s61 = int_to_ptr.hbm [resolvable:$true] %s60
      %s62 = sshll.u32 [#allocation8], 4
      %s63 = int_to_ptr.vmem [resolvable:$true] %s62
      %65 = dma.hbm_to_vmem [thread:$0]  %s61, 32, %s63, [#allocation9]
    $region21: #{tpu_custom_call.1} parent=1 // pred_fallthru
      _
    // Predicated region
    $region22: #{tpu_custom_call.1} parent=1 // pred_check
      _
    $region23: #{tpu_custom_call.1} parent=1 // pred_check_branch
      %67 = sbr.rel (0) target = $region25
    $region24: #{tpu_custom_call.1} parent=1 // pred_region
      %69 = vsyncadd [#allocation9], 0
      %s70 = sshll.u32 %s5, 4
      %s71 = int_to_ptr.hbm [resolvable:$true] %s70
      %s72 = sshll.u32 [#allocation10], 4
      %s73 = int_to_ptr.vmem [resolvable:$true] %s72
      %78 = dma.hbm_to_vmem [thread:$0]  %s71, 8192, %s73, [#allocation9], 256, 256, 16
    $region25: #{tpu_custom_call.1} parent=1 // pred_fallthru
      _
    // Predicated region
    $region26: #{tpu_custom_call.1} parent=1 // pred_check
      _
    $region27: #{tpu_custom_call.1} parent=1 // pred_check_branch
      %80 = sbr.rel (0) target = $region29
    $region28: #{tpu_custom_call.1} parent=1 // pred_region
      _
    $region29: #{tpu_custom_call.1} parent=1 // pred_fallthru
      _
    // Predicated region
    $region30: #{tpu_custom_call.1} parent=1 // pred_check
      _
    $region31: #{tpu_custom_call.1} parent=1 // pred_check_branch
      %82 = sbr.rel (0) target = $region33
    $region32: #{tpu_custom_call.1} parent=1 // pred_region
      %84 = dma.done [#allocation3], 16
    $region33: #{tpu_custom_call.1} parent=1 // pred_fallthru
      _
    // Predicated region
    $region34: #{tpu_custom_call.1} parent=1 // pred_check
      _
    $region35: #{tpu_custom_call.1} parent=1 // pred_check_branch
      %86 = sbr.rel (0) target = $region37
    $region36: #{tpu_custom_call.1} parent=1 // pred_region
      %88 = dma.done [#allocation6], 256
    $region37: #{tpu_custom_call.1} parent=1 // pred_fallthru
      _
    // Predicated region
    $region38: #{tpu_custom_call.1} parent=1 // pred_check
      _
    $region39: #{tpu_custom_call.1} parent=1 // pred_check_branch
      %90 = sbr.rel (0) target = $region41
    $region40: #{tpu_custom_call.1} parent=1 // pred_region
      %92 = dma.done [#allocation6], 2048
    $region41: #{tpu_custom_call.1} parent=1 // pred_fallthru
      _
    // Predicated region
    $region42: #{tpu_custom_call.1} parent=1 // pred_check
      _
    $region43: #{tpu_custom_call.1} parent=1 // pred_check_branch
      %94 = sbr.rel (0) target = $region45
    $region44: #{tpu_custom_call.1} parent=1 // pred_region
      %96 = dma.done [#allocation9], 32
    $region45: #{tpu_custom_call.1} parent=1 // pred_fallthru
      _
    // Predicated region
    $region46: #{tpu_custom_call.1} parent=1 // pred_check
      _
    $region47: #{tpu_custom_call.1} parent=1 // pred_check_branch
      %98 = sbr.rel (0) target = $region49
    $region48: #{tpu_custom_call.1} parent=1 // pred_region
      %100 = dma.done [#allocation9], 8192
    $region49: #{tpu_custom_call.1} parent=1 // pred_fallthru
      _
    %v102 = vld [vmem:[#allocation2] sm:$0x1]
    %v103 = vld [vmem:[#allocation5] sm:$0xf]
    %v104 = vld [vmem:[#allocation5 + $0x4] sm:$0xf]
    %v105 = vld [vmem:[#allocation5 + $0x8] sm:$0xf]
    %v106 = vld [vmem:[#allocation5 + $0xc] sm:$0xf]
    %v107 = vld [vmem:[%s2] sm:$0x1]
    %v109 = vperm.slane %v107, 0
    %v115 = vunpack.c.l.b16 %v103
    %v116 = vunpack.c.l.b16 %v104
    %v117 = vunpack.c.l.b16 %v105
    %v118 = vunpack.c.l.b16 %v106
    %v119 = vpack.c.b16 %v116, %v115
    %v120 = vpack.c.b16 %v118, %v117
    %vm123 = vcmask 261120
    %v125 = vsel %vm123, %v102, 0
    %127 = vmatpush.bf16.msra.mxu0 0
    %128 = vmatpush.bf16.msra.mxu0 0
    %129 = vmatpush.bf16.msra.mxu0 0
    %130 = vmatpush.bf16.msra.mxu0 0
    %131 = vmatpush.bf16.msra.mxu0 0
    %132 = vmatpush.bf16.msra.mxu0 0
    %133 = vmatpush.bf16.msra.mxu0 %v120
    %134 = vmatpush.bf16.msra.mxu0 %v119
    %135 = vmatmul.bf16.gmra.mxu0 %v125
    %v136 = vpop.f32.mrf.mxu0
    %v137 = vadd.f32 %v109, %v136
    %v138 = vpop.f32.mrf.mxu0
    %139 = vdwg.mxu0
    %v140 = vmax.f32 %v137, 0.0
    %v141 = vpack.c.bf16 %v140, %v140
    %v142 = vld [vmem:[#allocation7] sm:$0xff]
    %v143 = vld [vmem:[#allocation7 + $0x8] sm:$0xff]
    %v144 = vld [vmem:[#allocation7 + $0x10] sm:$0xff]
    %v145 = vld [vmem:[#allocation7 + $0x18] sm:$0xff]
    %v146 = vld [vmem:[#allocation7 + $0x20] sm:$0xff]
    %v147 = vld [vmem:[#allocation7 + $0x28] sm:$0xff]
    %v148 = vld [vmem:[#allocation7 + $0x30] sm:$0xff]
    %v149 = vld [vmem:[#allocation7 + $0x38] sm:$0xff]
    %v150 = vld [vmem:[#allocation7 + $0x40] sm:$0xff]
    %v151 = vld [vmem:[#allocation7 + $0x48] sm:$0xff]
    %v152 = vld [vmem:[#allocation7 + $0x50] sm:$0xff]
    %v153 = vld [vmem:[#allocation7 + $0x58] sm:$0xff]
    %v154 = vld [vmem:[#allocation7 + $0x60] sm:$0xff]
    %v155 = vld [vmem:[#allocation7 + $0x68] sm:$0xff]
    %v156 = vld [vmem:[#allocation7 + $0x70] sm:$0xff]
    %v157 = vld [vmem:[#allocation7 + $0x78] sm:$0xff]
    %v158 = vld [vmem:[#allocation8] sm:$0x3]
    %v160 = vperm.slane %v158, 0
    %v161 = vperm.slane %v158, 1
    %v180 = vunpack.c.l.b16 %v142
    %v181 = vunpack.c.h.b16 %v142
    %v182 = vunpack.c.l.b16 %v143
    %v183 = vunpack.c.h.b16 %v143
    %v184 = vunpack.c.l.b16 %v144
    %v185 = vunpack.c.h.b16 %v144
    %v186 = vunpack.c.l.b16 %v145
    %v187 = vunpack.c.h.b16 %v145
    %v188 = vunpack.c.l.b16 %v146
    %v189 = vunpack.c.h.b16 %v146
    %v190 = vunpack.c.l.b16 %v147
    %v191 = vunpack.c.h.b16 %v147
    %v192 = vunpack.c.l.b16 %v148
    %v193 = vunpack.c.h.b16 %v148
    %v194 = vunpack.c.l.b16 %v149
    %v195 = vunpack.c.h.b16 %v149
    %v196 = vunpack.c.l.b16 %v150
    %v197 = vunpack.c.h.b16 %v150
    %v198 = vunpack.c.l.b16 %v151
    %v199 = vunpack.c.h.b16 %v151
    %v200 = vunpack.c.l.b16 %v152
    %v201 = vunpack.c.h.b16 %v152
    %v202 = vunpack.c.l.b16 %v153
    %v203 = vunpack.c.h.b16 %v153
    %v204 = vunpack.c.l.b16 %v154
    %v205 = vunpack.c.h.b16 %v154
    %v206 = vunpack.c.l.b16 %v155
    %v207 = vunpack.c.h.b16 %v155
    %v208 = vunpack.c.l.b16 %v156
    %v209 = vunpack.c.h.b16 %v156
    %v210 = vunpack.c.l.b16 %v157
    %v211 = vunpack.c.h.b16 %v157
    %v212 = vpack.c.b16 %v182, %v180
    %v213 = vpack.c.b16 %v183, %v181
    %v214 = vpack.c.b16 %v186, %v184
    %v215 = vpack.c.b16 %v187, %v185
    %v216 = vpack.c.b16 %v190, %v188
    %v217 = vpack.c.b16 %v191, %v189
    %v218 = vpack.c.b16 %v194, %v192
    %v219 = vpack.c.b16 %v195, %v193
    %v220 = vpack.c.b16 %v198, %v196
    %v221 = vpack.c.b16 %v199, %v197
    %v222 = vpack.c.b16 %v202, %v200
    %v223 = vpack.c.b16 %v203, %v201
    %v224 = vpack.c.b16 %v206, %v204
    %v225 = vpack.c.b16 %v207, %v205
    %v226 = vpack.c.b16 %v210, %v208
    %v227 = vpack.c.b16 %v211, %v209
    %244 = vmatpush.bf16.msra.mxu0 %v226
    %245 = vmatpush.bf16.msra.mxu0 %v224
    %246 = vmatpush.bf16.msra.mxu0 %v222
    %247 = vmatpush.bf16.msra.mxu0 %v220
    %248 = vmatpush.bf16.msra.mxu0 %v218
    %249 = vmatpush.bf16.msra.mxu0 %v216
    %250 = vmatpush.bf16.msra.mxu0 %v214
    %251 = vmatpush.bf16.msra.mxu0 %v212
    %252 = vmatmul.bf16.gmra.mxu0 %v141
    %v253 = vpop.f32.mrf.mxu0
    %v254 = vadd.f32 %v160, %v253
    %v255 = vpop.f32.mrf.mxu0
    %256 = vdwg.mxu0
    %257 = vmatpush.bf16.msra.mxu0 %v227
    %258 = vmatpush.bf16.msra.mxu0 %v225
    %259 = vmatpush.bf16.msra.mxu0 %v223
    %260 = vmatpush.bf16.msra.mxu0 %v221
    %261 = vmatpush.bf16.msra.mxu0 %v219
    %262 = vmatpush.bf16.msra.mxu0 %v217
    %263 = vmatpush.bf16.msra.mxu0 %v215
    %264 = vmatpush.bf16.msra.mxu0 %v213
    %265 = vmatmul.bf16.gmra.mxu0 %v141
    %v266 = vpop.f32.mrf.mxu0
    %v267 = vadd.f32 %v161, %v266
    %v268 = vpop.f32.mrf.mxu0
    %269 = vdwg.mxu0
    %v270 = vmax.f32 %v254, 0.0
    %v271 = vmax.f32 %v267, 0.0
    %v272 = vpack.c.bf16 %v270, %v270
    %v273 = vpack.c.bf16 %v271, %v271
    %v274 = vld [vmem:[#allocation10] sm:$0xff]
    %v275 = vld [vmem:[#allocation10 + $0x8] sm:$0xff]
    %v276 = vld [vmem:[#allocation10 + $0x10] sm:$0xff]
    %v277 = vld [vmem:[#allocation10 + $0x18] sm:$0xff]
    %v278 = vld [vmem:[#allocation10 + $0x20] sm:$0xff]
    %v279 = vld [vmem:[#allocation10 + $0x28] sm:$0xff]
    %v280 = vld [vmem:[#allocation10 + $0x30] sm:$0xff]
    %v281 = vld [vmem:[#allocation10 + $0x38] sm:$0xff]
    %v282 = vld [vmem:[#allocation10 + $0x40] sm:$0xff]
    %v283 = vld [vmem:[#allocation10 + $0x48] sm:$0xff]
    %v284 = vld [vmem:[#allocation10 + $0x50] sm:$0xff]
    %v285 = vld [vmem:[#allocation10 + $0x58] sm:$0xff]
    %v286 = vld [vmem:[#allocation10 + $0x60] sm:$0xff]
    %v287 = vld [vmem:[#allocation10 + $0x68] sm:$0xff]
    %v288 = vld [vmem:[#allocation10 + $0x70] sm:$0xff]
    %v289 = vld [vmem:[#allocation10 + $0x78] sm:$0xff]
    %v290 = vld [vmem:[#allocation10 + $0x80] sm:$0xff]
    %v291 = vld [vmem:[#allocation10 + $0x88] sm:$0xff]
    %v292 = vld [vmem:[#allocation10 + $0x90] sm:$0xff]
    %v293 = vld [vmem:[#allocation10 + $0x98] sm:$0xff]
    %v294 = vld [vmem:[#allocation10 + $0xa0] sm:$0xff]
    %v295 = vld [vmem:[#allocation10 + $0xa8] sm:$0xff]
    %v296 = vld [vmem:[#allocation10 + $0xb0] sm:$0xff]
    %v297 = vld [vmem:[#allocation10 + $0xb8] sm:$0xff]
    %v298 = vld [vmem:[#allocation10 + $0xc0] sm:$0xff]
    %v299 = vld [vmem:[#allocation10 + $0xc8] sm:$0xff]
    %v300 = vld [vmem:[#allocation10 + $0xd0] sm:$0xff]
    %v301 = vld [vmem:[#allocation10 + $0xd8] sm:$0xff]
    %v302 = vld [vmem:[#allocation10 + $0xe0] sm:$0xff]
    %v303 = vld [vmem:[#allocation10 + $0xe8] sm:$0xff]
    %v304 = vld [vmem:[#allocation10 + $0xf0] sm:$0xff]
    %v305 = vld [vmem:[#allocation10 + $0xf8] sm:$0xff]
    %v306 = vld [vmem:[#allocation10 + $0x100] sm:$0xff]
    %v307 = vld [vmem:[#allocation10 + $0x108] sm:$0xff]
    %v308 = vld [vmem:[#allocation10 + $0x110] sm:$0xff]
    %v309 = vld [vmem:[#allocation10 + $0x118] sm:$0xff]
    %v310 = vld [vmem:[#allocation10 + $0x120] sm:$0xff]
    %v311 = vld [vmem:[#allocation10 + $0x128] sm:$0xff]
    %v312 = vld [vmem:[#allocation10 + $0x130] sm:$0xff]
    %v313 = vld [vmem:[#allocation10 + $0x138] sm:$0xff]
    %v314 = vld [vmem:[#allocation10 + $0x140] sm:$0xff]
    %v315 = vld [vmem:[#allocation10 + $0x148] sm:$0xff]
    %v316 = vld [vmem:[#allocation10 + $0x150] sm:$0xff]
    %v317 = vld [vmem:[#allocation10 + $0x158] sm:$0xff]
    %v318 = vld [vmem:[#allocation10 + $0x160] sm:$0xff]
    %v319 = vld [vmem:[#allocation10 + $0x168] sm:$0xff]
    %v320 = vld [vmem:[#allocation10 + $0x170] sm:$0xff]
    %v321 = vld [vmem:[#allocation10 + $0x178] sm:$0xff]
    %v322 = vld [vmem:[#allocation10 + $0x180] sm:$0xff]
    %v323 = vld [vmem:[#allocation10 + $0x188] sm:$0xff]
    %v324 = vld [vmem:[#allocation10 + $0x190] sm:$0xff]
    %v325 = vld [vmem:[#allocation10 + $0x198] sm:$0xff]
    %v326 = vld [vmem:[#allocation10 + $0x1a0] sm:$0xff]
    %v327 = vld [vmem:[#allocation10 + $0x1a8] sm:$0xff]
    %v328 = vld [vmem:[#allocation10 + $0x1b0] sm:$0xff]
    %v329 = vld [vmem:[#allocation10 + $0x1b8] sm:$0xff]
    %v330 = vld [vmem:[#allocation10 + $0x1c0] sm:$0xff]
    %v331 = vld [vmem:[#allocation10 + $0x1c8] sm:$0xff]
    %v332 = vld [vmem:[#allocation10 + $0x1d0] sm:$0xff]
    %v333 = vld [vmem:[#allocation10 + $0x1d8] sm:$0xff]
    %v334 = vld [vmem:[#allocation10 + $0x1e0] sm:$0xff]
    %v335 = vld [vmem:[#allocation10 + $0x1e8] sm:$0xff]
    %v336 = vld [vmem:[#allocation10 + $0x1f0] sm:$0xff]
    %v337 = vld [vmem:[#allocation10 + $0x1f8] sm:$0xff]
    %v338 = vld [vmem:[%s6] sm:$0xf]
    %v340 = vperm.slane %v338, 0
    %v341 = vperm.slane %v338, 1
    %v342 = vperm.slane %v338, 2
    %v343 = vperm.slane %v338, 3
    %v412 = vunpack.c.l.b16 %v274
    %v413 = vunpack.c.h.b16 %v274
    %v414 = vunpack.c.l.b16 %v275
    %v415 = vunpack.c.h.b16 %v275
    %v416 = vunpack.c.l.b16 %v276
    %v417 = vunpack.c.h.b16 %v276
    %v418 = vunpack.c.l.b16 %v277
    %v419 = vunpack.c.h.b16 %v277
    %v420 = vunpack.c.l.b16 %v278
    %v421 = vunpack.c.h.b16 %v278
    %v422 = vunpack.c.l.b16 %v279
    %v423 = vunpack.c.h.b16 %v279
    %v424 = vunpack.c.l.b16 %v280
    %v425 = vunpack.c.h.b16 %v280
    %v426 = vunpack.c.l.b16 %v281
    %v427 = vunpack.c.h.b16 %v281
    %v428 = vunpack.c.l.b16 %v282
    %v429 = vunpack.c.h.b16 %v282
    %v430 = vunpack.c.l.b16 %v283
    %v431 = vunpack.c.h.b16 %v283
    %v432 = vunpack.c.l.b16 %v284
    %v433 = vunpack.c.h.b16 %v284
    %v434 = vunpack.c.l.b16 %v285
    %v435 = vunpack.c.h.b16 %v285
    %v436 = vunpack.c.l.b16 %v286
    %v437 = vunpack.c.h.b16 %v286
    %v438 = vunpack.c.l.b16 %v287
    %v439 = vunpack.c.h.b16 %v287
    %v440 = vunpack.c.l.b16 %v288
    %v441 = vunpack.c.h.b16 %v288
    %v442 = vunpack.c.l.b16 %v289
    %v443 = vunpack.c.h.b16 %v289
    %v444 = vunpack.c.l.b16 %v290
    %v445 = vunpack.c.h.b16 %v290
    %v446 = vunpack.c.l.b16 %v291
    %v447 = vunpack.c.h.b16 %v291
    %v448 = vunpack.c.l.b16 %v292
    %v449 = vunpack.c.h.b16 %v292
    %v450 = vunpack.c.l.b16 %v293
    %v451 = vunpack.c.h.b16 %v293
    %v452 = vunpack.c.l.b16 %v294
    %v453 = vunpack.c.h.b16 %v294
    %v454 = vunpack.c.l.b16 %v295
    %v455 = vunpack.c.h.b16 %v295
    %v456 = vunpack.c.l.b16 %v296
    %v457 = vunpack.c.h.b16 %v296
    %v458 = vunpack.c.l.b16 %v297
    %v459 = vunpack.c.h.b16 %v297
    %v460 = vunpack.c.l.b16 %v298
    %v461 = vunpack.c.h.b16 %v298
    %v462 = vunpack.c.l.b16 %v299
    %v463 = vunpack.c.h.b16 %v299
    %v464 = vunpack.c.l.b16 %v300
    %v465 = vunpack.c.h.b16 %v300
    %v466 = vunpack.c.l.b16 %v301
    %v467 = vunpack.c.h.b16 %v301
    %v468 = vunpack.c.l.b16 %v302
    %v469 = vunpack.c.h.b16 %v302
    %v470 = vunpack.c.l.b16 %v303
    %v471 = vunpack.c.h.b16 %v303
    %v472 = vunpack.c.l.b16 %v304
    %v473 = vunpack.c.h.b16 %v304
    %v474 = vunpack.c.l.b16 %v305
    %v475 = vunpack.c.h.b16 %v305
    %v476 = vunpack.c.l.b16 %v306
    %v477 = vunpack.c.h.b16 %v306
    %v478 = vunpack.c.l.b16 %v307
    %v479 = vunpack.c.h.b16 %v307
    %v480 = vunpack.c.l.b16 %v308
    %v481 = vunpack.c.h.b16 %v308
    %v482 = vunpack.c.l.b16 %v309
    %v483 = vunpack.c.h.b16 %v309
    %v484 = vunpack.c.l.b16 %v310
    %v485 = vunpack.c.h.b16 %v310
    %v486 = vunpack.c.l.b16 %v311
    %v487 = vunpack.c.h.b16 %v311
    %v488 = vunpack.c.l.b16 %v312
    %v489 = vunpack.c.h.b16 %v312
    %v490 = vunpack.c.l.b16 %v313
    %v491 = vunpack.c.h.b16 %v313
    %v492 = vunpack.c.l.b16 %v314
    %v493 = vunpack.c.h.b16 %v314
    %v494 = vunpack.c.l.b16 %v315
    %v495 = vunpack.c.h.b16 %v315
    %v496 = vunpack.c.l.b16 %v316
    %v497 = vunpack.c.h.b16 %v316
    %v498 = vunpack.c.l.b16 %v317
    %v499 = vunpack.c.h.b16 %v317
    %v500 = vunpack.c.l.b16 %v318
    %v501 = vunpack.c.h.b16 %v318
    %v502 = vunpack.c.l.b16 %v319
    %v503 = vunpack.c.h.b16 %v319
    %v504 = vunpack.c.l.b16 %v320
    %v505 = vunpack.c.h.b16 %v320
    %v506 = vunpack.c.l.b16 %v321
    %v507 = vunpack.c.h.b16 %v321
    %v508 = vunpack.c.l.b16 %v322
    %v509 = vunpack.c.h.b16 %v322
    %v510 = vunpack.c.l.b16 %v323
    %v511 = vunpack.c.h.b16 %v323
    %v512 = vunpack.c.l.b16 %v324
    %v513 = vunpack.c.h.b16 %v324
    %v514 = vunpack.c.l.b16 %v325
    %v515 = vunpack.c.h.b16 %v325
    %v516 = vunpack.c.l.b16 %v326
    %v517 = vunpack.c.h.b16 %v326
    %v518 = vunpack.c.l.b16 %v327
    %v519 = vunpack.c.h.b16 %v327
    %v520 = vunpack.c.l.b16 %v328
    %v521 = vunpack.c.h.b16 %v328
    %v522 = vunpack.c.l.b16 %v329
    %v523 = vunpack.c.h.b16 %v329
    %v524 = vunpack.c.l.b16 %v330
    %v525 = vunpack.c.h.b16 %v330
    %v526 = vunpack.c.l.b16 %v331
    %v527 = vunpack.c.h.b16 %v331
    %v528 = vunpack.c.l.b16 %v332
    %v529 = vunpack.c.h.b16 %v332
    %v530 = vunpack.c.l.b16 %v333
    %v531 = vunpack.c.h.b16 %v333
    %v532 = vunpack.c.l.b16 %v334
    %v533 = vunpack.c.h.b16 %v334
    %v534 = vunpack.c.l.b16 %v335
    %v535 = vunpack.c.h.b16 %v335
    %v536 = vunpack.c.l.b16 %v336
    %v537 = vunpack.c.h.b16 %v336
    %v538 = vunpack.c.l.b16 %v337
    %v539 = vunpack.c.h.b16 %v337
    %v540 = vpack.c.b16 %v416, %v412
    %v541 = vpack.c.b16 %v417, %v413
    %v542 = vpack.c.b16 %v418, %v414
    %v543 = vpack.c.b16 %v419, %v415
    %v544 = vpack.c.b16 %v424, %v420
    %v545 = vpack.c.b16 %v425, %v421
    %v546 = vpack.c.b16 %v426, %v422
    %v547 = vpack.c.b16 %v427, %v423
    %v548 = vpack.c.b16 %v432, %v428
    %v549 = vpack.c.b16 %v433, %v429
    %v550 = vpack.c.b16 %v434, %v430
    %v551 = vpack.c.b16 %v435, %v431
    %v552 = vpack.c.b16 %v440, %v436
    %v553 = vpack.c.b16 %v441, %v437
    %v554 = vpack.c.b16 %v442, %v438
    %v555 = vpack.c.b16 %v443, %v439
    %v556 = vpack.c.b16 %v448, %v444
    %v557 = vpack.c.b16 %v449, %v445
    %v558 = vpack.c.b16 %v450, %v446
    %v559 = vpack.c.b16 %v451, %v447
    %v560 = vpack.c.b16 %v456, %v452
    %v561 = vpack.c.b16 %v457, %v453
    %v562 = vpack.c.b16 %v458, %v454
    %v563 = vpack.c.b16 %v459, %v455
    %v564 = vpack.c.b16 %v464, %v460
    %v565 = vpack.c.b16 %v465, %v461
    %v566 = vpack.c.b16 %v466, %v462
    %v567 = vpack.c.b16 %v467, %v463
    %v568 = vpack.c.b16 %v472, %v468
    %v569 = vpack.c.b16 %v473, %v469
    %v570 = vpack.c.b16 %v474, %v470
    %v571 = vpack.c.b16 %v475, %v471
    %v572 = vpack.c.b16 %v480, %v476
    %v573 = vpack.c.b16 %v481, %v477
    %v574 = vpack.c.b16 %v482, %v478
    %v575 = vpack.c.b16 %v483, %v479
    %v576 = vpack.c.b16 %v488, %v484
    %v577 = vpack.c.b16 %v489, %v485
    %v578 = vpack.c.b16 %v490, %v486
    %v579 = vpack.c.b16 %v491, %v487
    %v580 = vpack.c.b16 %v496, %v492
    %v581 = vpack.c.b16 %v497, %v493
    %v582 = vpack.c.b16 %v498, %v494
    %v583 = vpack.c.b16 %v499, %v495
    %v584 = vpack.c.b16 %v504, %v500
    %v585 = vpack.c.b16 %v505, %v501
    %v586 = vpack.c.b16 %v506, %v502
    %v587 = vpack.c.b16 %v507, %v503
    %v588 = vpack.c.b16 %v512, %v508
    %v589 = vpack.c.b16 %v513, %v509
    %v590 = vpack.c.b16 %v514, %v510
    %v591 = vpack.c.b16 %v515, %v511
    %v592 = vpack.c.b16 %v520, %v516
    %v593 = vpack.c.b16 %v521, %v517
    %v594 = vpack.c.b16 %v522, %v518
    %v595 = vpack.c.b16 %v523, %v519
    %v596 = vpack.c.b16 %v528, %v524
    %v597 = vpack.c.b16 %v529, %v525
    %v598 = vpack.c.b16 %v530, %v526
    %v599 = vpack.c.b16 %v531, %v527
    %v600 = vpack.c.b16 %v536, %v532
    %v601 = vpack.c.b16 %v537, %v533
    %v602 = vpack.c.b16 %v538, %v534
    %v603 = vpack.c.b16 %v539, %v535
    %668 = vmatpush.bf16.msra.mxu0 %v568
    %669 = vmatpush.bf16.msra.mxu0 %v564
    %670 = vmatpush.bf16.msra.mxu0 %v560
    %671 = vmatpush.bf16.msra.mxu0 %v556
    %672 = vmatpush.bf16.msra.mxu0 %v552
    %673 = vmatpush.bf16.msra.mxu0 %v548
    %674 = vmatpush.bf16.msra.mxu0 %v544
    %675 = vmatpush.bf16.msra.mxu0 %v540
    %676 = vmatmul.bf16.gmra.mxu0 %v272
    %v677 = vpop.f32.mrf.mxu0
    %v678 = vadd.f32 %v340, %v677
    %v679 = vpop.f32.mrf.mxu0
    %680 = vdwg.mxu0
    %681 = vmatpush.bf16.msra.mxu0 %v600
    %682 = vmatpush.bf16.msra.mxu0 %v596
    %683 = vmatpush.bf16.msra.mxu0 %v592
    %684 = vmatpush.bf16.msra.mxu0 %v588
    %685 = vmatpush.bf16.msra.mxu0 %v584
    %686 = vmatpush.bf16.msra.mxu0 %v580
    %687 = vmatpush.bf16.msra.mxu0 %v576
    %688 = vmatpush.bf16.msra.mxu0 %v572
    %689 = vmatmul.bf16.gmra.mxu0 %v273
    %v690 = vpop.f32.mrf.mxu0
    %v691 = vadd.f32 %v678, %v690
    %v692 = vpop.f32.mrf.mxu0
    %693 = vdwg.mxu0
    %694 = vmatpush.bf16.msra.mxu0 %v569
    %695 = vmatpush.bf16.msra.mxu0 %v565
    %696 = vmatpush.bf16.msra.mxu0 %v561
    %697 = vmatpush.bf16.msra.mxu0 %v557
    %698 = vmatpush.bf16.msra.mxu0 %v553
    %699 = vmatpush.bf16.msra.mxu0 %v549
    %700 = vmatpush.bf16.msra.mxu0 %v545
    %701 = vmatpush.bf16.msra.mxu0 %v541
    %702 = vmatmul.bf16.gmra.mxu0 %v272
    %v703 = vpop.f32.mrf.mxu0
    %v704 = vadd.f32 %v341, %v703
    %v705 = vpop.f32.mrf.mxu0
    %706 = vdwg.mxu0
    %707 = vmatpush.bf16.msra.mxu0 %v601
    %708 = vmatpush.bf16.msra.mxu0 %v597
    %709 = vmatpush.bf16.msra.mxu0 %v593
    %710 = vmatpush.bf16.msra.mxu0 %v589
    %711 = vmatpush.bf16.msra.mxu0 %v585
    %712 = vmatpush.bf16.msra.mxu0 %v581
    %713 = vmatpush.bf16.msra.mxu0 %v577
    %714 = vmatpush.bf16.msra.mxu0 %v573
    %715 = vmatmul.bf16.gmra.mxu0 %v273
    %v716 = vpop.f32.mrf.mxu0
    %v717 = vadd.f32 %v704, %v716
    %v718 = vpop.f32.mrf.mxu0
    %719 = vdwg.mxu0
    %720 = vmatpush.bf16.msra.mxu0 %v570
    %721 = vmatpush.bf16.msra.mxu0 %v566
    %722 = vmatpush.bf16.msra.mxu0 %v562
    %723 = vmatpush.bf16.msra.mxu0 %v558
    %724 = vmatpush.bf16.msra.mxu0 %v554
    %725 = vmatpush.bf16.msra.mxu0 %v550
    %726 = vmatpush.bf16.msra.mxu0 %v546
    %727 = vmatpush.bf16.msra.mxu0 %v542
    %728 = vmatmul.bf16.gmra.mxu0 %v272
    %v729 = vpop.f32.mrf.mxu0
    %v730 = vadd.f32 %v342, %v729
    %v731 = vpop.f32.mrf.mxu0
    %732 = vdwg.mxu0
    %733 = vmatpush.bf16.msra.mxu0 %v602
    %734 = vmatpush.bf16.msra.mxu0 %v598
    %735 = vmatpush.bf16.msra.mxu0 %v594
    %736 = vmatpush.bf16.msra.mxu0 %v590
    %737 = vmatpush.bf16.msra.mxu0 %v586
    %738 = vmatpush.bf16.msra.mxu0 %v582
    %739 = vmatpush.bf16.msra.mxu0 %v578
    %740 = vmatpush.bf16.msra.mxu0 %v574
    %741 = vmatmul.bf16.gmra.mxu0 %v273
    %v742 = vpop.f32.mrf.mxu0
    %v743 = vadd.f32 %v730, %v742
    %v744 = vpop.f32.mrf.mxu0
    %745 = vdwg.mxu0
    %746 = vmatpush.bf16.msra.mxu0 %v571
    %747 = vmatpush.bf16.msra.mxu0 %v567
    %748 = vmatpush.bf16.msra.mxu0 %v563
    %749 = vmatpush.bf16.msra.mxu0 %v559
    %750 = vmatpush.bf16.msra.mxu0 %v555
    %751 = vmatpush.bf16.msra.mxu0 %v551
    %752 = vmatpush.bf16.msra.mxu0 %v547
    %753 = vmatpush.bf16.msra.mxu0 %v543
    %754 = vmatmul.bf16.gmra.mxu0 %v272
    %v755 = vpop.f32.mrf.mxu0
    %v756 = vadd.f32 %v343, %v755
    %v757 = vpop.f32.mrf.mxu0
    %758 = vdwg.mxu0
    %759 = vmatpush.bf16.msra.mxu0 %v603
    %760 = vmatpush.bf16.msra.mxu0 %v599
    %761 = vmatpush.bf16.msra.mxu0 %v595
    %762 = vmatpush.bf16.msra.mxu0 %v591
    %763 = vmatpush.bf16.msra.mxu0 %v587
    %764 = vmatpush.bf16.msra.mxu0 %v583
    %765 = vmatpush.bf16.msra.mxu0 %v579
    %766 = vmatpush.bf16.msra.mxu0 %v575
    %767 = vmatmul.bf16.gmra.mxu0 %v273
    %v768 = vpop.f32.mrf.mxu0
    %v769 = vadd.f32 %v756, %v768
    %v770 = vpop.f32.mrf.mxu0
    %771 = vdwg.mxu0
    %v776 = vrot.slane %v717, 6
    %v777 = vrot.slane %v743, 4
    %v778 = vrot.slane %v769, 2
    %vm779 = vcmask 1041408
    %v780 = vsel %vm779, %v691, %v776
    %vm781 = vcmask 1045508
    %v782 = vsel %vm781, %v777, %v778
    %vm783 = vcmask 1043456
    %v784 = vsel %vm783, %v780, %v782
    %786 = vst [vmem:[#allocation11] sm:$0xff] %v784
    // Predicated region
    $region50: #{tpu_custom_call.1} parent=1 // pred_check
      _
    $region51: #{tpu_custom_call.1} parent=1 // pred_check_branch
      %788 = sbr.rel (0) target = $region53
    $region52: #{tpu_custom_call.1} parent=1 // pred_region
      %790 = vsyncadd [#allocation4], 0
      %s792 = sshll.u32 [#allocation11], 4
      %s793 = int_to_ptr.vmem [resolvable:$true] %s792
      %s794 = sshll.u32 %s7, 4
      %s795 = int_to_ptr.hbm [resolvable:$true] %s794
      %797 = dma.vmem_to_hbm [thread:$0]  %s793, 128, %s795, [#allocation4]
    $region53: #{tpu_custom_call.1} parent=1 // pred_fallthru
      _
    // Predicated region
    $region54: #{tpu_custom_call.1} parent=1 // pred_check
      _
    $region55: #{tpu_custom_call.1} parent=1 // pred_check_branch
      %799 = sbr.rel (0) target = $region57
    $region56: #{tpu_custom_call.1} parent=1 // pred_region
      %801 = dma.done [#allocation4], 128
    $region57: #{tpu_custom_call.1} parent=1 // pred_fallthru
      _
    %802 = vsyncpa [#allocation3], 1
    %803 = vsyncpa [#allocation6], 1
    %804 = vsyncpa [#allocation9], 1
    %805 = vsyncpa [#allocation4], 1

</llo_original>
